<compile_context>
chip_gen: v7x
topology: tpu7x:2x2x1
jax: 0.10.0
libtpu: 0.0.40
codegen_flags: <defaults>
</compile_context>

<pallas_src>
import jax
import jax.numpy as jnp
from jax import lax
from jax.experimental import pallas as pl
from jax.experimental.pallas import tpu as pltpu


# ----------------------------------------------------------------------------
# Pallas kernel: fused Linear -> PReLU -> Linear for one batch tile
# ----------------------------------------------------------------------------
def _classifier_kernel(alpha_ref, x_ref, w1_ref, b1_ref, w2_ref, b2_ref, o_ref):
    # x   : [TB, E]  bf16
    # w1  : [T,  E]  bf16  (torch Linear layout [out, in] — NOT pre-transposed)
    # b1  : [1,  T]  f32
    # w2  : [C,  T]  bf16
    # b2  : [1,  C]  f32
    # out : [TB, C]  f32

    # Linear 1: contract the 'in' (E) axis of both operands -> [TB, T].
    # MXU consumes either rhs orientation natively; f32 accumulation.
    h = lax.dot_general(
        x_ref[...], w1_ref[...],
        dimension_numbers=(((1,), (1,)), ((), ())),
        preferred_element_type=jnp.float32,
    ) + b1_ref[...]                                              # [TB, T] f32

    # PReLU with a single shared parameter (torch.nn.PReLU() default).
    # Elementwise math kept in f32 (v5e VPU has no bf16).
    a = alpha_ref[...]                                           # [1, 1] f32
    h = jnp.where(h >= 0.0, h, a * h)                            # [TB, T] f32

    # Linear 2: cast activations to bf16 for the MXU, accumulate in f32.
    y = lax.dot_general(
        h.astype(jnp.bfloat16), w2_ref[...],
        dimension_numbers=(((1,), (1,)), ((), ())),
        preferred_element_type=jnp.float32,
    ) + b2_ref[...]                                              # [TB, C] f32

    o_ref[...] = y.astype(o_ref.dtype)


def doc_classifier_forward(enc_in, w1, b1, w2, b2, alpha, *, tile_b=8):
    """enc_in: [B,E] f32, w1: [T,E], b1: [T], w2: [C,T], b2: [C] (torch layouts),
    alpha: PReLU scalar. Returns [B, C] f32 logits."""
    B, E = enc_in.shape
    T, _ = w1.shape
    C, _ = w2.shape
    assert B % tile_b == 0, "pad batch to a multiple of tile_b"
    # TODO(synk): at production batch sizes re-derive tile_b / vmem_limit_bytes
    # for v7x's 64 MiB VMEM (half of v5e/v6e).

    grid = (B // tile_b,)
    out = pl.pallas_call(
        _classifier_kernel,
        out_shape=jax.ShapeDtypeStruct((B, C), jnp.float32),
        grid_spec=pltpu.PrefetchScalarGridSpec(
            num_scalar_prefetch=0,
            grid=grid,
            in_specs=[
                pl.BlockSpec((1, 1), lambda i: (0, 0)),            # alpha
                pl.BlockSpec((tile_b, E), lambda i: (i, 0)),       # enc_in tile
                pl.BlockSpec((T, E), lambda i: (0, 0)),            # w1 (resident)
                pl.BlockSpec((1, T), lambda i: (0, 0)),            # b1
                pl.BlockSpec((C, T), lambda i: (0, 0)),            # w2 (resident)
                pl.BlockSpec((1, C), lambda i: (0, 0)),            # b2
            ],
            out_specs=pl.BlockSpec((tile_b, C), lambda i: (i, 0)),
        ),
        compiler_params=pltpu.CompilerParams(
            dimension_semantics=("parallel",)),
    )(
        jnp.asarray(alpha, jnp.float32).reshape(1, 1),
        enc_in.astype(jnp.bfloat16),          # bf16 MXU inputs, f32 accumulation
        w1.astype(jnp.bfloat16),              # torch [out, in] layout, no .T
        b1.reshape(1, T).astype(jnp.float32),
        w2.astype(jnp.bfloat16),
        b2.reshape(1, C).astype(jnp.float32),
    )
    return out


# ----------------------------------------------------------------------------
# Glue: simple deterministic bag-of-tokens encoder (plain JAX gathers)
# ----------------------------------------------------------------------------
# TODO(synk): longer term, fold the embedding gathers + mean into the kernel
# via PrefetchScalarGridSpec (token ids as scalar prefetch) + manual DMA
# gathers, removing one HBM round-trip of the [B,E] encoder output.
def encode(lang_ids, toks, params):
    """lang_ids: [B,1] int32, toks: [3,B,Ctx] int32 (break/caps/text ids).
    Returns [B, E] float32 doc embeddings."""
    brk = params["break_emb"][toks[0]]                   # [B, Ctx, E]
    cap = params["caps_emb"][toks[1]]                    # [B, Ctx, E]
    txt = params["text_emb"][toks[2]]                    # [B, Ctx, E]
    tok_vec = jnp.mean(brk + cap + txt, axis=1)          # [B, E]
    lang_vec = params["lang_emb"][lang_ids.reshape(-1)]  # [B, E]
    return (tok_vec + lang_vec).astype(jnp.float32)


def reference_forward(enc_in, w1, b1, w2, b2, alpha):
    h = enc_in @ w1.T + b1
    h = jnp.where(h >= 0.0, h, alpha * h)                # PReLU
    return h @ w2.T + b2


# ----------------------------------------------------------------------------
# Main
# ----------------------------------------------------------------------------
if __name__ == "__main__":
    B = 16            # batch (multiple of the 8-row batch tile)
    CTX = 8           # tokens per doc
    E = 128           # hyper_params.universal.embed_size
    N_CLASSES = 128   # n_classes (lane-dense output)
    RATIO = 2.0       # hyper_params.classification.transformer_ratio
    T = int(RATIO * N_CLASSES)   # transformer_size = 256
    LANG_VOCAB = 16
    TEXT_VOCAB = 64
    BREAK_MODES = 4
    CAPS_MODES = 3

    key = jax.random.PRNGKey(0)
    ks = jax.random.split(key, 10)

    params = {
        "lang_emb": 0.05 * jax.random.normal(ks[0], (LANG_VOCAB, E), jnp.float32),
        "text_emb": 0.05 * jax.random.normal(ks[1], (TEXT_VOCAB, E), jnp.float32),
        "break_emb": 0.05 * jax.random.normal(ks[2], (BREAK_MODES, E), jnp.float32),
        "caps_emb": 0.05 * jax.random.normal(ks[3], (CAPS_MODES, E), jnp.float32),
        # input_transformer: Linear(E, T)   (torch layout weight = [out, in])
        "w1": 0.05 * jax.random.normal(ks[4], (T, E), jnp.float32),
        "b1": 0.01 * jax.random.normal(ks[5], (T,), jnp.float32),
        # output_decoder: Linear(T, N_CLASSES)
        "w2": 0.05 * jax.random.normal(ks[6], (N_CLASSES, T), jnp.float32),
        "b2": 0.01 * jax.random.normal(ks[7], (N_CLASSES,), jnp.float32),
        "prelu_alpha": jnp.float32(0.25),    # torch.nn.PReLU() default init
    }

    lang_inputs = jax.random.randint(ks[8], (B, 1), 2, LANG_VOCAB - 1, jnp.int32)
    k1, k2, k3 = jax.random.split(ks[9], 3)
    toks_inputs = jnp.stack([
        jax.random.randint(k1, (B, CTX), 0, BREAK_MODES, jnp.int32),
        jax.random.randint(k2, (B, CTX), 0, CAPS_MODES, jnp.int32),
        jax.random.randint(k3, (B, CTX), 0, TEXT_VOCAB, jnp.int32),
    ])

    # --- encoder (glue, plain JAX gathers) ---
    enc_in = encode(lang_inputs, toks_inputs, params)          # [B, E]

    # --- Pallas hot path: Linear -> PReLU -> Linear ---
    logits = doc_classifier_forward(
        enc_in, params["w1"], params["b1"], params["w2"], params["b2"],
        params["prelu_alpha"], tile_b=8)
    logits = jax.block_until_ready(logits)

    ref = reference_forward(enc_in, params["w1"], params["b1"],
                            params["w2"], params["b2"], params["prelu_alpha"])

    assert logits.shape == (B, N_CLASSES), logits.shape
    assert jnp.all(jnp.isfinite(logits)), "non-finite logits"
    # bf16 MXU inputs with f32 accumulation -> loosened tolerance vs f32 ref.
    assert jnp.allclose(logits, ref, rtol=5e-2, atol=5e-3), (
        float(jnp.max(jnp.abs(logits - ref))))

    print("KERNEL_OK")
</pallas_src>

<mosaic_0001>
module attributes {stable_mosaic.version = 11 : i64} {
  func.func @_classifier_kernel(%arg0: i32, %arg1: memref<1x1xf32, #tpu.memory_space<vmem>>, %arg2: memref<8x128xbf16, #tpu.memory_space<vmem>>, %arg3: memref<256x128xbf16, #tpu.memory_space<vmem>>, %arg4: memref<1x256xf32, #tpu.memory_space<vmem>>, %arg5: memref<128x256xbf16, #tpu.memory_space<vmem>>, %arg6: memref<1x128xf32, #tpu.memory_space<vmem>>, %arg7: memref<8x128xf32, #tpu.memory_space<vmem>>) attributes {dimension_semantics = [#tpu.dimension_semantics<parallel>], iteration_bounds = array<i64: 2>, scalar_prefetch = 0 : i64, scratch_operands = 0 : i64, tpu.core_type = #tpu.core_type<tc>, window_params = [{pipeline_mode = #tpu.pipeline_mode<synchronous>, transform_indices = @transform_0, window_bounds = array<i64: 1, 1>}, {transform_indices = @transform_1, window_bounds = array<i64: 8, 128>}, {pipeline_mode = #tpu.pipeline_mode<synchronous>, transform_indices = @transform_2, window_bounds = array<i64: 256, 128>}, {pipeline_mode = #tpu.pipeline_mode<synchronous>, transform_indices = @transform_3, window_bounds = array<i64: 1, 256>}, {pipeline_mode = #tpu.pipeline_mode<synchronous>, transform_indices = @transform_4, window_bounds = array<i64: 128, 256>}, {pipeline_mode = #tpu.pipeline_mode<synchronous>, transform_indices = @transform_5, window_bounds = array<i64: 1, 128>}, {transform_indices = @transform_6, window_bounds = array<i64: 8, 128>}]} {
    %c0 = arith.constant 0 : index
    %c0_0 = arith.constant 0 : index
    %0 = vector.load %arg2[%c0, %c0_0] : memref<8x128xbf16, #tpu.memory_space<vmem>>, vector<8x128xbf16>
    %c0_1 = arith.constant 0 : index
    %c0_2 = arith.constant 0 : index
    %1 = vector.load %arg3[%c0_1, %c0_2] : memref<256x128xbf16, #tpu.memory_space<vmem>>, vector<256x128xbf16>
    %cst = arith.constant dense<0.000000e+00> : vector<8x256xf32>
    %2 = tpu.matmul %0, %1, %cst {dimension_numbers = #tpu.dot_dimension_numbers<[1], [1], [0], [0], [0, 0, 1, 0], [], []>} : vector<8x128xbf16>, vector<256x128xbf16>, vector<8x256xf32> -> vector<8x256xf32>
    %c0_3 = arith.constant 0 : index
    %c0_4 = arith.constant 0 : index
    %3 = vector.load %arg4[%c0_3, %c0_4] : memref<1x256xf32, #tpu.memory_space<vmem>>, vector<1x256xf32>
    %4 = vector.broadcast %3 : vector<1x256xf32> to vector<8x256xf32>
    %5 = arith.addf %2, %4 : vector<8x256xf32>
    %c0_5 = arith.constant 0 : index
    %c0_6 = arith.constant 0 : index
    %6 = vector.load %arg1[%c0_5, %c0_6] : memref<1x1xf32, #tpu.memory_space<vmem>>, vector<1x1xf32>
    %cst_7 = arith.constant 0.000000e+00 : f32
    %7 = vector.broadcast %cst_7 : f32 to vector<8x256xf32>
    %8 = arith.cmpf oge, %5, %7 : vector<8x256xf32>
    %9 = vector.broadcast %6 : vector<1x1xf32> to vector<8x256xf32>
    %10 = arith.mulf %9, %5 : vector<8x256xf32>
    %11 = arith.select %8, %5, %10 : vector<8x256xi1>, vector<8x256xf32>
    %12 = arith.truncf %11 : vector<8x256xf32> to vector<8x256xbf16>
    %c0_8 = arith.constant 0 : index
    %c0_9 = arith.constant 0 : index
    %13 = vector.load %arg5[%c0_8, %c0_9] : memref<128x256xbf16, #tpu.memory_space<vmem>>, vector<128x256xbf16>
    %cst_10 = arith.constant dense<0.000000e+00> : vector<8x128xf32>
    %14 = tpu.matmul %12, %13, %cst_10 {dimension_numbers = #tpu.dot_dimension_numbers<[1], [1], [0], [0], [0, 0, 1, 0], [], []>} : vector<8x256xbf16>, vector<128x256xbf16>, vector<8x128xf32> -> vector<8x128xf32>
    %c0_11 = arith.constant 0 : index
    %c0_12 = arith.constant 0 : index
    %15 = vector.load %arg6[%c0_11, %c0_12] : memref<1x128xf32, #tpu.memory_space<vmem>>, vector<1x128xf32>
    %16 = vector.broadcast %15 : vector<1x128xf32> to vector<8x128xf32>
    %17 = arith.addf %14, %16 : vector<8x128xf32>
    %c0_13 = arith.constant 0 : index
    %c0_14 = arith.constant 0 : index
    %18 = vector.load %arg7[%c0_13, %c0_14] : memref<8x128xf32, #tpu.memory_space<vmem>>, vector<8x128xf32>
    tpu.vector_store %arg7[%c0_13, %c0_14], %17 {strides = array<i32>} : memref<8x128xf32, #tpu.memory_space<vmem>>, vector<8x128xf32>,
    return
  }
  func.func @transform_0(%arg0: i32) -> (i32, i32) {
    %c0_i32 = arith.constant 0 : i32
    %c0_i32_0 = arith.constant 0 : i32
    %c0_i32_1 = arith.constant 0 : i32
    return %c0_i32, %c0_i32_0 : i32, i32
  }
  func.func @transform_1(%arg0: i32) -> (i32, i32) {
    %c0_i32 = arith.constant 0 : i32
    %c0_i32_0 = arith.constant 0 : i32
    return %arg0, %c0_i32 : i32, i32
  }
  func.func @transform_2(%arg0: i32) -> (i32, i32) {
    %c0_i32 = arith.constant 0 : i32
    %c0_i32_0 = arith.constant 0 : i32
    %c0_i32_1 = arith.constant 0 : i32
    return %c0_i32, %c0_i32_0 : i32, i32
  }
  func.func @transform_3(%arg0: i32) -> (i32, i32) {
    %c0_i32 = arith.constant 0 : i32
    %c0_i32_0 = arith.constant 0 : i32
    %c0_i32_1 = arith.constant 0 : i32
    return %c0_i32, %c0_i32_0 : i32, i32
  }
  func.func @transform_4(%arg0: i32) -> (i32, i32) {
    %c0_i32 = arith.constant 0 : i32
    %c0_i32_0 = arith.constant 0 : i32
    %c0_i32_1 = arith.constant 0 : i32
    return %c0_i32, %c0_i32_0 : i32, i32
  }
  func.func @transform_5(%arg0: i32) -> (i32, i32) {
    %c0_i32 = arith.constant 0 : i32
    %c0_i32_0 = arith.constant 0 : i32
    %c0_i32_1 = arith.constant 0 : i32
    return %c0_i32, %c0_i32_0 : i32, i32
  }
  func.func @transform_6(%arg0: i32) -> (i32, i32) {
    %c0_i32 = arith.constant 0 : i32
    %c0_i32_0 = arith.constant 0 : i32
    return %arg0, %c0_i32 : i32, i32
  }
}

</mosaic_0001>

<llo_original>
// kernel: tpu_custom_call.1
$region0: #{tpu_custom_call.1}
  #allocation0 [shape = 'u32[]', space=smem, size = 0x4, offset = 0x4, fixed_abs, tag = 'smem constant byte address 0x4 - core index']
  #allocation1 [shape = 'u32[144,128]{1,0:T(1,128)}', space=vmem, size = 0x12000, scoped, tag = 'internal scratch']
  #allocation2 [shape = 'f32[1,1]{1,0:T(1,128)S(1)}', space=vmem, size = 0x200, scoped, tag = 'scoped memory for tpu_custom_call.1']
  %s0 = inlined_call_operand.<no memory space> [shape: f32[1,1], index: 0, kind: input, shape index: {}]
  %s1 = inlined_call_operand.hbm [shape: bf16[16,128], index: 1, kind: input, shape index: {}]
  %s2 = inlined_call_operand.hbm [shape: bf16[256,128], index: 2, kind: input, shape index: {}]
  %s3 = inlined_call_operand.vmem [shape: f32[1,256], index: 3, kind: input, shape index: {}]
  %s4 = inlined_call_operand.hbm [shape: bf16[128,256], index: 4, kind: input, shape index: {}]
  %s5 = inlined_call_operand.vmem [shape: f32[1,128], index: 5, kind: input, shape index: {}]
  %s6 = inlined_call_operand.hbm [shape: f32[16,128], index: 6, kind: output, shape index: {}]
  %s7 = sld [smem:[#allocation0]]
  $region69: #{tpu_custom_call.1} parent=0
    _
  %s9 = ssub.s32 1, %s7
  %s10 = scalar_select 0, %s9, %s7
  %v11 = vstv %s0
  %12 = vst [vmem:[#allocation2] sm:$0x1] %v11
  $region1: #{tpu_custom_call.1} parent=0
    #allocation3 [shape = 'u8[4096]{0}', space=vmem, size = 0x1000, scoped, tag = 'input window, operand 1']
    #allocation4 [shape = 's32[2]{0}', space=sflag, size = 0x8, scoped, tag = 'scoped memory for tpu_custom_call.1']
    #allocation5 [shape = 's32[2]{0}', space=sflag, size = 0x8, scoped, tag = 'scoped memory for tpu_custom_call.1']
    #allocation6 [shape = 'u8[65536]{0}', space=vmem, size = 0x10000, scoped, tag = 'input window, operand 2, single buffered']
    #allocation7 [shape = 's32[1]{0}', space=sflag, size = 0x4, scoped, tag = 'scoped memory for tpu_custom_call.1']
    #allocation8 [shape = 'u8[65536]{0}', space=vmem, size = 0x10000, scoped, tag = 'input window, operand 4, single buffered']
    #allocation9 [shape = 'u8[8192]{0}', space=vmem, size = 0x2000, scoped, tag = 'output window, operand 0']
    %13 = vsyncpa [#allocation4], 0
    %s14 = scalar_lea.sflag [#allocation4], 1
    %15 = vsyncpa %s14, 0
    %16 = vsyncpa [#allocation7], 0
    %17 = vsyncpa [#allocation5], 0
    %s18 = scalar_lea.sflag [#allocation5], 1
    %19 = vsyncpa %s18, 0
    loop: start=0, step=1, limit=4
    $region2: #{tpu_custom_call.1} parent=1 // loop_pre_header
      _
    $region3: #{tpu_custom_call.1} parent=1 // loop_header
      %s21 = sphi 0, %s25
      %p22 = scmp.ge.s32.totalorder %s21, 4
      %s29 = sphi 0, %s29
      %s31 = sphi 0, %s29
      %s32 = sphi 0, %s31
      %s46 = sphi 0, %s32
      %s52 = sphi 0, %s54
      %s55 = sphi 0, %s52
      %s56 = sphi 0, %s55
      %s72 = sphi 0, %s56
      %s76 = sphi 0, %s76
      %s78 = sphi 0, %s76
      %s79 = sphi 0, %s78
      %s93 = sphi 0, %s79
      %s97 = sphi 0, %s97
      %s99 = sphi 0, %s97
      %s100 = sphi 0, %s99
      %s114 = sphi 0, %s100
      %s118 = sphi 0, %s118
      %s120 = sphi 0, %s118
      %s121 = sphi 0, %s120
      %s135 = sphi 0, %s121
      %s139 = sphi 0, %s139
      %s141 = sphi 0, %s139
      %s142 = sphi 0, %s141
      %s156 = sphi 0, %s142
      %s162 = sphi 0, %s164
      %s165 = sphi 0, %s162
      %s166 = sphi 0, %s165
      %s182 = sphi 0, %s166
    $region4: #{tpu_custom_call.1} parent=1 // loop_header_branch
      %24 = sbr.rel (%p22) target = $region8
    $region5: #{tpu_custom_call.1} parent=1 // loop_body
      %s26 = ssub.s32 %s21, 1
      %s27 = ssub.s32 %s21, 2
      %s28 = sadd.s32 %s21, 1
      %s30 = sadd.s32 %s29, 1
      %p33 = scmp.eq.s32.totalorder %s21, 1
      %p34 = scmp.ne.s32.totalorder %s29, %s31
      %p35 = scmp.eq.s32.totalorder %s21, 0
      %p36 = por %p34, %p35
      %p37 = scmp.ne.s32.totalorder %s29, %s31
      %p38 = scmp.eq.s32.totalorder %s26, 1
      %p39 = por %p37, %p38
      %p40 = scmp.ne.s32.totalorder %s31, %s32
      %p41 = scmp.eq.s32.totalorder %s26, 0
      %p42 = por %p40, %p41
      %p43 = scmp.ne.s32.totalorder %s31, %s32
      %p44 = scmp.eq.s32.totalorder %s27, 1
      %p45 = por %p43, %p44
      %p47 = scmp.ne.s32.totalorder %s32, %s46
      %p48 = scmp.eq.s32.totalorder %s27, 0
      %p49 = por %p47, %p48
      %s50 = ssub.s32 %s21, %s28
      %p51 = scmp.eq.s32.totalorder %s50, 0
      %s53 = sadd.s32 %s52, 1
      %s54 = scalar_select %p51, %s52, %s53
      %p57 = pneg %p51
      %p58 = scmp.eq.s32.totalorder %s21, 1
      %p59 = por %p57, %p58
      %p60 = scmp.ne.s32.totalorder %s52, %s55
      %p61 = scmp.eq.s32.totalorder %s21, 0
      %p62 = por %p60, %p61
      %p63 = scmp.ne.s32.totalorder %s52, %s55
      %p64 = scmp.eq.s32.totalorder %s26, 1
      %p65 = por %p63, %p64
      %p66 = scmp.ne.s32.totalorder %s55, %s56
      %p67 = scmp.eq.s32.totalorder %s26, 0
      %p68 = por %p66, %p67
      %p69 = scmp.ne.s32.totalorder %s55, %s56
      %p70 = scmp.eq.s32.totalorder %s27, 1
      %p71 = por %p69, %p70
      %p73 = scmp.ne.s32.totalorder %s56, %s72
      %p74 = scmp.eq.s32.totalorder %s27, 0
      %p75 = por %p73, %p74
      %s77 = sadd.s32 %s76, 1
      %p80 = scmp.eq.s32.totalorder %s21, 1
      %p81 = scmp.ne.s32.totalorder %s76, %s78
      %p82 = scmp.eq.s32.totalorder %s21, 0
      %p83 = por %p81, %p82
      %p84 = scmp.ne.s32.totalorder %s76, %s78
      %p85 = scmp.eq.s32.totalorder %s26, 1
      %p86 = por %p84, %p85
      %p87 = scmp.ne.s32.totalorder %s78, %s79
      %p88 = scmp.eq.s32.totalorder %s26, 0
      %p89 = por %p87, %p88
      %p90 = scmp.ne.s32.totalorder %s78, %s79
      %p91 = scmp.eq.s32.totalorder %s27, 1
      %p92 = por %p90, %p91
      %p94 = scmp.ne.s32.totalorder %s79, %s93
      %p95 = scmp.eq.s32.totalorder %s27, 0
      %p96 = por %p94, %p95
      %s98 = sadd.s32 %s97, 1
      %p101 = scmp.eq.s32.totalorder %s21, 1
      %p102 = scmp.ne.s32.totalorder %s97, %s99
      %p103 = scmp.eq.s32.totalorder %s21, 0
      %p104 = por %p102, %p103
      %p105 = scmp.ne.s32.totalorder %s97, %s99
      %p106 = scmp.eq.s32.totalorder %s26, 1
      %p107 = por %p105, %p106
      %p108 = scmp.ne.s32.totalorder %s99, %s100
      %p109 = scmp.eq.s32.totalorder %s26, 0
      %p110 = por %p108, %p109
      %p111 = scmp.ne.s32.totalorder %s99, %s100
      %p112 = scmp.eq.s32.totalorder %s27, 1
      %p113 = por %p111, %p112
      %p115 = scmp.ne.s32.totalorder %s100, %s114
      %p116 = scmp.eq.s32.totalorder %s27, 0
      %p117 = por %p115, %p116
      %s119 = sadd.s32 %s118, 1
      %p122 = scmp.eq.s32.totalorder %s21, 1
      %p123 = scmp.ne.s32.totalorder %s118, %s120
      %p124 = scmp.eq.s32.totalorder %s21, 0
      %p125 = por %p123, %p124
      %p126 = scmp.ne.s32.totalorder %s118, %s120
      %p127 = scmp.eq.s32.totalorder %s26, 1
      %p128 = por %p126, %p127
      %p129 = scmp.ne.s32.totalorder %s120, %s121
      %p130 = scmp.eq.s32.totalorder %s26, 0
      %p131 = por %p129, %p130
      %p132 = scmp.ne.s32.totalorder %s120, %s121
      %p133 = scmp.eq.s32.totalorder %s27, 1
      %p134 = por %p132, %p133
      %p136 = scmp.ne.s32.totalorder %s121, %s135
      %p137 = scmp.eq.s32.totalorder %s27, 0
      %p138 = por %p136, %p137
      %s140 = sadd.s32 %s139, 1
      %p143 = scmp.eq.s32.totalorder %s21, 1
      %p144 = scmp.ne.s32.totalorder %s139, %s141
      %p145 = scmp.eq.s32.totalorder %s21, 0
      %p146 = por %p144, %p145
      %p147 = scmp.ne.s32.totalorder %s139, %s141
      %p148 = scmp.eq.s32.totalorder %s26, 1
      %p149 = por %p147, %p148
      %p150 = scmp.ne.s32.totalorder %s141, %s142
      %p151 = scmp.eq.s32.totalorder %s26, 0
      %p152 = por %p150, %p151
      %p153 = scmp.ne.s32.totalorder %s141, %s142
      %p154 = scmp.eq.s32.totalorder %s27, 1
      %p155 = por %p153, %p154
      %p157 = scmp.ne.s32.totalorder %s142, %s156
      %p158 = scmp.eq.s32.totalorder %s27, 0
      %p159 = por %p157, %p158
      %s160 = ssub.s32 %s21, %s28
      %p161 = scmp.eq.s32.totalorder %s160, 0
      %s163 = sadd.s32 %s162, 1
      %s164 = scalar_select %p161, %s162, %s163
      %p167 = pneg %p161
      %p168 = scmp.eq.s32.totalorder %s21, 1
      %p169 = por %p167, %p168
      %p170 = scmp.ne.s32.totalorder %s162, %s165
      %p171 = scmp.eq.s32.totalorder %s21, 0
      %p172 = por %p170, %p171
      %p173 = scmp.ne.s32.totalorder %s162, %s165
      %p174 = scmp.eq.s32.totalorder %s26, 1
      %p175 = por %p173, %p174
      %p176 = scmp.ne.s32.totalorder %s165, %s166
      %p177 = scmp.eq.s32.totalorder %s26, 0
      %p178 = por %p176, %p177
      %p179 = scmp.ne.s32.totalorder %s165, %s166
      %p180 = scmp.eq.s32.totalorder %s27, 1
      %p181 = por %p179, %p180
      %p183 = scmp.ne.s32.totalorder %s166, %s182
      %p184 = scmp.eq.s32.totalorder %s27, 0
      %p185 = por %p183, %p184
      %p186 = scmp.le.s32.totalorder 1, %s21
      %p187 = scmp.lt.s32.totalorder %s21, 3
      %p188 = pnand %p186, %p187
      %p189 = pneg %p188
      // Predicated region
      $region9: #{tpu_custom_call.1} parent=5 // pred_check
        _
      $region10: #{tpu_custom_call.1} parent=5 // pred_check_branch
        %191 = sbr.rel (%p188) target = $region12
      $region11: #{tpu_custom_call.1} parent=5 // pred_region
        %s192 = ssub.s32 %s21, 1
        // Predicated region
        $region13: #{tpu_custom_call.1} parent=11 // pred_check
          %p193 = pneg %p42
        $region14: #{tpu_custom_call.1} parent=11 // pred_check_branch
          %195 = sbr.rel (%p193) target = $region16
        $region15: #{tpu_custom_call.1} parent=11 // pred_region
          _
        $region16: #{tpu_custom_call.1} parent=11 // pred_fallthru
          _
        // Predicated region
        $region17: #{tpu_custom_call.1} parent=11 // pred_check
          %p196 = pneg %p89
        $region18: #{tpu_custom_call.1} parent=11 // pred_check_branch
          %198 = sbr.rel (%p196) target = $region20
        $region19: #{tpu_custom_call.1} parent=11 // pred_region
          %s200 = ssub.s32 2048, 2048
          %201 = vsyncadd [#allocation7], %s200
          %s202 = sshll.u32 [#allocation6], 4
          %s203 = int_to_ptr.vmem [resolvable:$true] %s202
          %208 = dma.hbm_to_vmem [thread:$0]  %s2, 2048, %s203, [#allocation7], 64, 64, 4
        $region20: #{tpu_custom_call.1} parent=11 // pred_fallthru
          _
        // Predicated region
        $region21: #{tpu_custom_call.1} parent=11 // pred_check
          %p209 = pneg %p110
        $region22: #{tpu_custom_call.1} parent=11 // pred_check_branch
          %211 = sbr.rel (%p209) target = $region24
        $region23: #{tpu_custom_call.1} parent=11 // pred_region
          _
        $region24: #{tpu_custom_call.1} parent=11 // pred_fallthru
          _
        // Predicated region
        $region25: #{tpu_custom_call.1} parent=11 // pred_check
          %p212 = pneg %p131
        $region26: #{tpu_custom_call.1} parent=11 // pred_check_branch
          %214 = sbr.rel (%p212) target = $region28
        $region27: #{tpu_custom_call.1} parent=11 // pred_region
          %s216 = ssub.s32 2048, 2048
          %217 = vsyncadd [#allocation7], %s216
          %s218 = sshll.u32 [#allocation8], 4
          %s219 = int_to_ptr.vmem [resolvable:$true] %s218
          %224 = dma.hbm_to_vmem [thread:$0]  %s4, 2048, %s219, [#allocation7], 128, 128, 8
        $region28: #{tpu_custom_call.1} parent=11 // pred_fallthru
          _
        // Predicated region
        $region29: #{tpu_custom_call.1} parent=11 // pred_check
          %p225 = pneg %p152
        $region30: #{tpu_custom_call.1} parent=11 // pred_check_branch
          %227 = sbr.rel (%p225) target = $region32
        $region31: #{tpu_custom_call.1} parent=11 // pred_region
          _
        $region32: #{tpu_custom_call.1} parent=11 // pred_fallthru
          _
      $region12: #{tpu_custom_call.1} parent=5 // pred_fallthru
        _
      %p228 = scmp.lt.s32.totalorder %s21, 2
      // Predicated region
      $region33: #{tpu_custom_call.1} parent=5 // pred_check
        %p229 = pneg %p228
      $region34: #{tpu_custom_call.1} parent=5 // pred_check_branch
        %231 = sbr.rel (%p229) target = $region36
      $region35: #{tpu_custom_call.1} parent=5 // pred_region
        // Predicated region
        $region37: #{tpu_custom_call.1} parent=35 // pred_check
          %p232 = pneg %p62
        $region38: #{tpu_custom_call.1} parent=35 // pred_check_branch
          %234 = sbr.rel (%p232) target = $region40
        $region39: #{tpu_custom_call.1} parent=35 // pred_region
          %s235 = sand.u32 %s52, 1
          %s236 = scalar_lea.sflag [#allocation4], %s235
          %s237 = sand.u32 %s52, 1
          %s238 = smul.addr %s237, 4
          %s239 = scalar_lea.vmem [#allocation3], %s238
          %s241 = ssub.s32 64, 64
          %242 = vsyncadd %s236, %s241
          %s243 = smul.addr %s21, 64
          %s244 = scalar_lea.hbm %s1, %s243
          %s246 = sshll.u32 %s239, 4
          %s247 = int_to_ptr.vmem [resolvable:$true] %s246
          %249 = dma.hbm_to_vmem [thread:$0]  %s244, 64, %s247, %s236
        $region40: #{tpu_custom_call.1} parent=35 // pred_fallthru
          _
      $region36: #{tpu_custom_call.1} parent=5 // pred_fallthru
        _
      %p250 = scmp.le.s32.totalorder 1, %s21
      %p251 = scmp.lt.s32.totalorder %s21, 3
      %p252 = pnand %p250, %p251
      %p253 = pneg %p252
      // Predicated region
      $region41: #{tpu_custom_call.1} parent=5 // pred_check
        _
      $region42: #{tpu_custom_call.1} parent=5 // pred_check_branch
        %255 = sbr.rel (%p252) target = $region44
      $region43: #{tpu_custom_call.1} parent=5 // pred_region
        %s256 = ssub.s32 %s21, 1
        %s257 = sand.u32 %s55, 1
        %s258 = scalar_lea.sflag [#allocation4], %s257
        %s259 = sand.u32 %s55, 1
        %s260 = smul.addr %s259, 4
        %s261 = scalar_lea.vmem [#allocation3], %s260
        // Predicated region
        $region45: #{tpu_custom_call.1} parent=43 // pred_check
          %p262 = pneg %p68
        $region46: #{tpu_custom_call.1} parent=43 // pred_check_branch
          %264 = sbr.rel (%p262) target = $region48
        $region47: #{tpu_custom_call.1} parent=43 // pred_region
          %265 = dma.done %s258, 64
        $region48: #{tpu_custom_call.1} parent=43 // pred_fallthru
          _
        // Predicated region
        $region49: #{tpu_custom_call.1} parent=43 // pred_check
          %p266 = pneg %p89
        $region50: #{tpu_custom_call.1} parent=43 // pred_check_branch
          %268 = sbr.rel (%p266) target = $region52
        $region51: #{tpu_custom_call.1} parent=43 // pred_region
          %269 = dma.done [#allocation7], 2048
        $region52: #{tpu_custom_call.1} parent=43 // pred_fallthru
          _
        // Predicated region
        $region53: #{tpu_custom_call.1} parent=43 // pred_check
          %p270 = pneg %p131
        $region54: #{tpu_custom_call.1} parent=43 // pred_check_branch
          %272 = sbr.rel (%p270) target = $region56
        $region55: #{tpu_custom_call.1} parent=43 // pred_region
          %273 = dma.done [#allocation7], 2048
        $region56: #{tpu_custom_call.1} parent=43 // pred_fallthru
          _
        %p274 = pneg %p42
        %p275 = pneg %p39
        %s276 = sand.u32 %s55, 1
        %s277 = scalar_lea.sflag [#allocation4], %s276
        %s278 = sand.u32 %s55, 1
        %s279 = smul.addr %s278, 4
        %s280 = scalar_lea.vmem [#allocation3], %s279
        %p281 = pneg %p68
        %p282 = pneg %p65
        %p283 = pneg %p89
        %p284 = pneg %p86
        %p285 = pneg %p110
        %p286 = pneg %p107
        %p287 = pneg %p131
        %p288 = pneg %p128
        %p289 = pneg %p152
        %p290 = pneg %p149
        %p291 = pneg %p178
        %p292 = pneg %p175
        %s293 = sand.u32 %s165, 1
        %s294 = scalar_lea.sflag [#allocation5], %s293
        %s295 = sand.u32 %s165, 1
        %s296 = smul.addr %s295, 8
        %s297 = scalar_lea.vmem [#allocation9], %s296
        %v299 = vld [vmem:[%s261] sm:$0xf]
        %v300 = vld [vmem:[#allocation6] sm:$0xf]
        %v301 = vld [vmem:[#allocation6 + $0x4] sm:$0xf]
        %v302 = vld [vmem:[#allocation6 + $0x8] sm:$0xf]
        %v303 = vld [vmem:[#allocation6 + $0xc] sm:$0xf]
        %v304 = vld [vmem:[#allocation6 + $0x10] sm:$0xf]
        %v305 = vld [vmem:[#allocation6 + $0x14] sm:$0xf]
        %v306 = vld [vmem:[#allocation6 + $0x18] sm:$0xf]
        %v307 = vld [vmem:[#allocation6 + $0x1c] sm:$0xf]
        %v308 = vld [vmem:[#allocation6 + $0x20] sm:$0xf]
        %v309 = vld [vmem:[#allocation6 + $0x24] sm:$0xf]
        %v310 = vld [vmem:[#allocation6 + $0x28] sm:$0xf]
        %v311 = vld [vmem:[#allocation6 + $0x2c] sm:$0xf]
        %v312 = vld [vmem:[#allocation6 + $0x30] sm:$0xf]
        %v313 = vld [vmem:[#allocation6 + $0x34] sm:$0xf]
        %v314 = vld [vmem:[#allocation6 + $0x38] sm:$0xf]
        %v315 = vld [vmem:[#allocation6 + $0x3c] sm:$0xf]
        %v316 = vld [vmem:[#allocation6 + $0x40] sm:$0xf]
        %v317 = vld [vmem:[#allocation6 + $0x44] sm:$0xf]
        %v318 = vld [vmem:[#allocation6 + $0x48] sm:$0xf]
        %v319 = vld [vmem:[#allocation6 + $0x4c] sm:$0xf]
        %v320 = vld [vmem:[#allocation6 + $0x50] sm:$0xf]
        %v321 = vld [vmem:[#allocation6 + $0x54] sm:$0xf]
        %v322 = vld [vmem:[#allocation6 + $0x58] sm:$0xf]
        %v323 = vld [vmem:[#allocation6 + $0x5c] sm:$0xf]
        %v324 = vld [vmem:[#allocation6 + $0x60] sm:$0xf]
        %v325 = vld [vmem:[#allocation6 + $0x64] sm:$0xf]
        %v326 = vld [vmem:[#allocation6 + $0x68] sm:$0xf]
        %v327 = vld [vmem:[#allocation6 + $0x6c] sm:$0xf]
        %v328 = vld [vmem:[#allocation6 + $0x70] sm:$0xf]
        %v329 = vld [vmem:[#allocation6 + $0x74] sm:$0xf]
        %v330 = vld [vmem:[#allocation6 + $0x78] sm:$0xf]
        %v331 = vld [vmem:[#allocation6 + $0x7c] sm:$0xf]
        %v332 = vld [vmem:[%s3] sm:$0x3]
        %v334 = vlaneseq
        %v335 = vshrl.u32 %v334, 7
        %v336 = vsub.s32 0, %v335
        %v337 = vrot.slane %v332, %v336
        %v338 = vlaneseq
        %v339 = vshrl.u32 %v338, 7
        %v340 = vsub.s32 1, %v339
        %v341 = vrot.slane %v332, %v340
        %v376 = vunpack.c.l.b16 %v300
        %v377 = vunpack.c.l.b16 %v301
        %v378 = vunpack.c.l.b16 %v302
        %v379 = vunpack.c.l.b16 %v303
        %v380 = vunpack.c.l.b16 %v304
        %v381 = vunpack.c.l.b16 %v305
        %v382 = vunpack.c.l.b16 %v306
        %v383 = vunpack.c.l.b16 %v307
        %v384 = vunpack.c.l.b16 %v308
        %v385 = vunpack.c.l.b16 %v309
        %v386 = vunpack.c.l.b16 %v310
        %v387 = vunpack.c.l.b16 %v311
        %v388 = vunpack.c.l.b16 %v312
        %v389 = vunpack.c.l.b16 %v313
        %v390 = vunpack.c.l.b16 %v314
        %v391 = vunpack.c.l.b16 %v315
        %v392 = vunpack.c.l.b16 %v316
        %v393 = vunpack.c.l.b16 %v317
        %v394 = vunpack.c.l.b16 %v318
        %v395 = vunpack.c.l.b16 %v319
        %v396 = vunpack.c.l.b16 %v320
        %v397 = vunpack.c.l.b16 %v321
        %v398 = vunpack.c.l.b16 %v322
        %v399 = vunpack.c.l.b16 %v323
        %v400 = vunpack.c.l.b16 %v324
        %v401 = vunpack.c.l.b16 %v325
        %v402 = vunpack.c.l.b16 %v326
        %v403 = vunpack.c.l.b16 %v327
        %v404 = vunpack.c.l.b16 %v328
        %v405 = vunpack.c.l.b16 %v329
        %v406 = vunpack.c.l.b16 %v330
        %v407 = vunpack.c.l.b16 %v331
        %v408 = vpack.c.b16 %v377, %v376
        %v409 = vpack.c.b16 %v379, %v378
        %v410 = vpack.c.b16 %v381, %v380
        %v411 = vpack.c.b16 %v383, %v382
        %v412 = vpack.c.b16 %v385, %v384
        %v413 = vpack.c.b16 %v387, %v386
        %v414 = vpack.c.b16 %v389, %v388
        %v415 = vpack.c.b16 %v391, %v390
        %v416 = vpack.c.b16 %v393, %v392
        %v417 = vpack.c.b16 %v395, %v394
        %v418 = vpack.c.b16 %v397, %v396
        %v419 = vpack.c.b16 %v399, %v398
        %v420 = vpack.c.b16 %v401, %v400
        %v421 = vpack.c.b16 %v403, %v402
        %v422 = vpack.c.b16 %v405, %v404
        %v423 = vpack.c.b16 %v407, %v406
        %440 = vmatprep.subr.bf16.mxu0 0
        %441 = vmatpush1.bf16.xpose.msra.mxu0 %v408
        %442 = vmatprep.subr.bf16.mxu0 0
        %443 = vmatpush1.bf16.xpose.msra.mxu0 %v409
        %444 = vmatprep.subr.bf16.mxu0 0
        %445 = vmatpush1.bf16.xpose.msra.mxu0 %v410
        %446 = vmatprep.subr.bf16.mxu0 0
        %447 = vmatpush1.bf16.xpose.msra.mxu0 %v411
        %448 = vmatprep.subr.bf16.mxu0 0
        %449 = vmatpush1.bf16.xpose.msra.mxu0 %v412
        %450 = vmatprep.subr.bf16.mxu0 0
        %451 = vmatpush1.bf16.xpose.msra.mxu0 %v413
        %452 = vmatprep.subr.bf16.mxu0 0
        %453 = vmatpush1.bf16.xpose.msra.mxu0 %v414
        %454 = vmatprep.subr.bf16.mxu0 0
        %455 = vmatpush1.bf16.xpose.msra.mxu0 %v415
        %456 = vmatprep.subr.bf16.mxu0 0
        %457 = vmatpush1.bf16.xpose.msra.mxu0 %v416
        %458 = vmatprep.subr.bf16.mxu0 0
        %459 = vmatpush1.bf16.xpose.msra.mxu0 %v417
        %460 = vmatprep.subr.bf16.mxu0 0
        %461 = vmatpush1.bf16.xpose.msra.mxu0 %v418
        %462 = vmatprep.subr.bf16.mxu0 0
        %463 = vmatpush1.bf16.xpose.msra.mxu0 %v419
        %464 = vmatprep.subr.bf16.mxu0 0
        %465 = vmatpush1.bf16.xpose.msra.mxu0 %v420
        %466 = vmatprep.subr.bf16.mxu0 0
        %467 = vmatpush1.bf16.xpose.msra.mxu0 %v421
        %468 = vmatprep.subr.bf16.mxu0 0
        %469 = vmatpush1.bf16.xpose.msra.mxu0 %v422
        %470 = vmatprep.subr.bf16.mxu0 0
        %471 = vmatpush1.bf16.xpose.msra.mxu0 %v423
        %472 = vmatprep.mubr.bf16.mxu0 0
        %473 = vmatmul.mubr.bf16.gmra.mrb[0].mxu0 %v299
        %v474 = vpop.f32.mrb[0].mxu0
        %v475 = vadd.f32 %v337, %v474
        %v476 = vpop.f32.mrb[0].mxu0
        %v477 = vadd.f32 %v341, %v476
        %v478 = vpop.f32.mrb[0].mxu0
        %v479 = vpop.f32.mrb[0].mxu0
        %480 = vdwg.mxu0
        %v481 = vld [vmem:[#allocation2] sm:$0x1]
        %vm482 = vcmp.ge.f32.partialorder %v475, 0.0
        %vm483 = vcmp.ge.f32.partialorder %v477, 0.0
        %v485 = vlaneseq
        %v486 = vshrl.u32 %v485, 7
        %v487 = vsub.s32 0, %v486
        %v488 = vrot.slane %v481, %v487
        %489 = vset.pattern.permute.xlu0 0
        %490 = vperm.xlu0 %489, %v488
        %v491 = vpop.permute.xlu0 %490
        %v493 = vmul.f32 %v491, %v475
        %v494 = vmul.f32 %v491, %v477
        %v495 = vsel %vm482, %v475, %v493
        %v496 = vsel %vm483, %v477, %v494
        %v497 = vpack.c.bf16 %v495, %v495
        %v498 = vpack.c.bf16 %v496, %v496
        %v499 = vld [vmem:[#allocation8] sm:$0xff]
        %v500 = vld [vmem:[#allocation8 + $0x8] sm:$0xff]
        %v501 = vld [vmem:[#allocation8 + $0x10] sm:$0xff]
        %v502 = vld [vmem:[#allocation8 + $0x18] sm:$0xff]
        %v503 = vld [vmem:[#allocation8 + $0x20] sm:$0xff]
        %v504 = vld [vmem:[#allocation8 + $0x28] sm:$0xff]
        %v505 = vld [vmem:[#allocation8 + $0x30] sm:$0xff]
        %v506 = vld [vmem:[#allocation8 + $0x38] sm:$0xff]
        %v507 = vld [vmem:[#allocation8 + $0x40] sm:$0xff]
        %v508 = vld [vmem:[#allocation8 + $0x48] sm:$0xff]
        %v509 = vld [vmem:[#allocation8 + $0x50] sm:$0xff]
        %v510 = vld [vmem:[#allocation8 + $0x58] sm:$0xff]
        %v511 = vld [vmem:[#allocation8 + $0x60] sm:$0xff]
        %v512 = vld [vmem:[#allocation8 + $0x68] sm:$0xff]
        %v513 = vld [vmem:[#allocation8 + $0x70] sm:$0xff]
        %v514 = vld [vmem:[#allocation8 + $0x78] sm:$0xff]
        %v515 = vld [vmem:[%s5] sm:$0x1]
        %v517 = vlaneseq
        %v518 = vshrl.u32 %v517, 7
        %v519 = vsub.s32 0, %v518
        %v520 = vrot.slane %v515, %v519
        %v538 = vunpack.c.l.b16 %v499
        %v539 = vunpack.c.h.b16 %v499
        %v540 = vunpack.c.l.b16 %v500
        %v541 = vunpack.c.h.b16 %v500
        %v542 = vunpack.c.l.b16 %v501
        %v543 = vunpack.c.h.b16 %v501
        %v544 = vunpack.c.l.b16 %v502
        %v545 = vunpack.c.h.b16 %v502
        %v546 = vunpack.c.l.b16 %v503
        %v547 = vunpack.c.h.b16 %v503
        %v548 = vunpack.c.l.b16 %v504
        %v549 = vunpack.c.h.b16 %v504
        %v550 = vunpack.c.l.b16 %v505
        %v551 = vunpack.c.h.b16 %v505
        %v552 = vunpack.c.l.b16 %v506
        %v553 = vunpack.c.h.b16 %v506
        %v554 = vunpack.c.l.b16 %v507
        %v555 = vunpack.c.h.b16 %v507
        %v556 = vunpack.c.l.b16 %v508
        %v557 = vunpack.c.h.b16 %v508
        %v558 = vunpack.c.l.b16 %v509
        %v559 = vunpack.c.h.b16 %v509
        %v560 = vunpack.c.l.b16 %v510
        %v561 = vunpack.c.h.b16 %v510
        %v562 = vunpack.c.l.b16 %v511
        %v563 = vunpack.c.h.b16 %v511
        %v564 = vunpack.c.l.b16 %v512
        %v565 = vunpack.c.h.b16 %v512
        %v566 = vunpack.c.l.b16 %v513
        %v567 = vunpack.c.h.b16 %v513
        %v568 = vunpack.c.l.b16 %v514
        %v569 = vunpack.c.h.b16 %v514
        %v570 = vpack.c.b16 %v540, %v538
        %v571 = vpack.c.b16 %v541, %v539
        %v572 = vpack.c.b16 %v544, %v542
        %v573 = vpack.c.b16 %v545, %v543
        %v574 = vpack.c.b16 %v548, %v546
        %v575 = vpack.c.b16 %v549, %v547
        %v576 = vpack.c.b16 %v552, %v550
        %v577 = vpack.c.b16 %v553, %v551
        %v578 = vpack.c.b16 %v556, %v554
        %v579 = vpack.c.b16 %v557, %v555
        %v580 = vpack.c.b16 %v560, %v558
        %v581 = vpack.c.b16 %v561, %v559
        %v582 = vpack.c.b16 %v564, %v562
        %v583 = vpack.c.b16 %v565, %v563
        %v584 = vpack.c.b16 %v568, %v566
        %v585 = vpack.c.b16 %v569, %v567
        %602 = vmatprep.subr.bf16.mxu0 %v571
        %603 = vmatpush1.bf16.xpose.msra.mxu0 %v570
        %604 = vmatprep.subr.bf16.mxu0 %v573
        %605 = vmatpush1.bf16.xpose.msra.mxu0 %v572
        %606 = vmatprep.subr.bf16.mxu0 %v575
        %607 = vmatpush1.bf16.xpose.msra.mxu0 %v574
        %608 = vmatprep.subr.bf16.mxu0 %v577
        %609 = vmatpush1.bf16.xpose.msra.mxu0 %v576
        %610 = vmatprep.subr.bf16.mxu0 %v579
        %611 = vmatpush1.bf16.xpose.msra.mxu0 %v578
        %612 = vmatprep.subr.bf16.mxu0 %v581
        %613 = vmatpush1.bf16.xpose.msra.mxu0 %v580
        %614 = vmatprep.subr.bf16.mxu0 %v583
        %615 = vmatpush1.bf16.xpose.msra.mxu0 %v582
        %616 = vmatprep.subr.bf16.mxu0 %v585
        %617 = vmatpush1.bf16.xpose.msra.mxu0 %v584
        %618 = vmatprep.subr.bf16.mxu0 0
        %619 = vmatpush1.bf16.xpose.msra.mxu0 0
        %620 = vmatprep.subr.bf16.mxu0 0
        %621 = vmatpush1.bf16.xpose.msra.mxu0 0
        %622 = vmatprep.subr.bf16.mxu0 0
        %623 = vmatpush1.bf16.xpose.msra.mxu0 0
        %624 = vmatprep.subr.bf16.mxu0 0
        %625 = vmatpush1.bf16.xpose.msra.mxu0 0
        %626 = vmatprep.subr.bf16.mxu0 0
        %627 = vmatpush1.bf16.xpose.msra.mxu0 0
        %628 = vmatprep.subr.bf16.mxu0 0
        %629 = vmatpush1.bf16.xpose.msra.mxu0 0
        %630 = vmatprep.subr.bf16.mxu0 0
        %631 = vmatpush1.bf16.xpose.msra.mxu0 0
        %632 = vmatprep.subr.bf16.mxu0 0
        %633 = vmatpush1.bf16.xpose.msra.mxu0 0
        %634 = vmatprep.mubr.bf16.mxu0 %v498
        %635 = vmatmul.mubr.bf16.gmra.mrb[0].mxu0 %v497
        %v636 = vpop.f32.mrb[0].mxu0
        %v637 = vadd.f32 %v520, %v636
        %v638 = vpop.f32.mrb[0].mxu0
        %v639 = vpop.f32.mrb[0].mxu0
        %v640 = vpop.f32.mrb[0].mxu0
        %641 = vdwg.mxu0
        %642 = vst [vmem:[%s297] sm:$0xff] %v637
        %s643 = sand.u32 %s165, 1
        %s644 = scalar_lea.sflag [#allocation5], %s643
        %s645 = sand.u32 %s165, 1
        %s646 = smul.addr %s645, 8
        %s647 = scalar_lea.vmem [#allocation9], %s646
        // Predicated region
        $region57: #{tpu_custom_call.1} parent=43 // pred_check
          %p648 = pneg %p175
        $region58: #{tpu_custom_call.1} parent=43 // pred_check_branch
          %650 = sbr.rel (%p648) target = $region60
        $region59: #{tpu_custom_call.1} parent=43 // pred_region
          %s652 = ssub.s32 128, 128
          %653 = vsyncadd %s644, %s652
          %s654 = smul.addr %s26, 128
          %s655 = scalar_lea.hbm %s6, %s654
          %s657 = sshll.u32 %s647, 4
          %s658 = int_to_ptr.vmem [resolvable:$true] %s657
          %660 = dma.vmem_to_hbm [thread:$0]  %s658, 128, %s655, %s644
        $region60: #{tpu_custom_call.1} parent=43 // pred_fallthru
          _
      $region44: #{tpu_custom_call.1} parent=5 // pred_fallthru
        _
      %p661 = scmp.le.s32.totalorder 2, %s21
      // Predicated region
      $region61: #{tpu_custom_call.1} parent=5 // pred_check
        %p662 = pneg %p661
      $region62: #{tpu_custom_call.1} parent=5 // pred_check_branch
        %664 = sbr.rel (%p662) target = $region64
      $region63: #{tpu_custom_call.1} parent=5 // pred_region
        %s665 = ssub.s32 %s21, 2
        // Predicated region
        $region65: #{tpu_custom_call.1} parent=63 // pred_check
          %p666 = pneg %p181
        $region66: #{tpu_custom_call.1} parent=63 // pred_check_branch
          %668 = sbr.rel (%p666) target = $region68
        $region67: #{tpu_custom_call.1} parent=63 // pred_region
          %s669 = sand.u32 %s166, 1
          %s670 = scalar_lea.sflag [#allocation5], %s669
          %s671 = sand.u32 %s166, 1
          %s672 = smul.addr %s671, 8
          %s673 = scalar_lea.vmem [#allocation9], %s672
          %674 = dma.done %s670, 128
        $region68: #{tpu_custom_call.1} parent=63 // pred_fallthru
          _
      $region64: #{tpu_custom_call.1} parent=5 // pred_fallthru
        _
    $region6: #{tpu_custom_call.1} parent=1 // loop_footer
      %s25 = sadd.s32 1, %s21
    $region7: #{tpu_custom_call.1} parent=1 // loop_footer_branch
      %20 = sbr.rel target = $region3
    $region8: #{tpu_custom_call.1} parent=1 // loop_exit
      _
    %675 = vsyncpa [#allocation4], 1
    %s676 = scalar_lea.sflag [#allocation4], 1
    %677 = vsyncpa %s676, 1
    %678 = vsyncpa [#allocation7], 1
    %679 = vsyncpa [#allocation5], 1
    %s680 = scalar_lea.sflag [#allocation5], 1
    %681 = vsyncpa %s680, 1

</llo_original>
